<compile_context>
chip_gen: v5e
topology: v5e:2x2
jax: 0.10.0
libtpu: 0.0.40
codegen_flags: <defaults>
</compile_context>

<pallas_src>
import numpy as np
import jax
import jax.numpy as jnp
from jax.experimental import pallas as pl
from jax.experimental.pallas import tpu as pltpu

KERNEL = 3  # kernel_size=3 -> PyTorch default stride=3, padding=0, floor mode


def _round_up(x, m):
    return (x + m - 1) // m * m


def _roll_down(a, s):
    """out[..., i] = a[..., (i + s) % L]  (bring the lane `s` to the right down to i)."""
    if s == 0:
        return a
    return jnp.roll(a, -s, axis=-1)


def _compaction_schedule(h_out, w_out, w_in, l_in):
    """Static log-step schedule moving lane 3*ho*w_in + 3*j -> lane ho*w_out + j.

    Returns (shifts, masks): shifts[t] is the static left shift of step t and
    masks[t] marks the destination lanes that take the shifted-in value.  The
    per-element travel distance is non-decreasing in the output index, so lane
    positions stay strictly increasing after every step => collision free.
    """
    n_out = h_out * w_out
    q = np.arange(n_out)
    pos = 3 * (q // w_out) * w_in + 3 * (q % w_out)   # source lane of output q
    dist = pos - q                                     # total left travel
    assert np.all(dist >= 0) and np.all(np.diff(dist) >= 0)

    shifts, masks = [], []
    bit = 0
    while np.any(dist > 0):
        s = 1 << bit
        moving = (dist & s) != 0
        if moving.any():
            new_pos = pos - np.where(moving, s, 0)
            assert len(np.unique(new_pos)) == n_out, "lane collision in schedule"
            mask = np.zeros((l_in,), np.int32)
            mask[new_pos[moving]] = 1
            shifts.append(int(s))
            masks.append(mask)
            pos, dist = new_pos, dist - np.where(moving, s, 0)
        bit += 1
    assert np.array_equal(pos, q)

    if masks:
        return shifts, np.stack(masks, axis=0)
    # Degenerate 1x1 output: nothing to move, keep a dummy (1, L) mask input.
    return [], np.zeros((1, l_in), np.int32)


def _make_kernel(w_in, l_out, shifts):
    def kernel(mask_ref, x_ref, o_ref):
        x = x_ref[...]                                   # (nc_b, H*W): lanes = flat image
        # 1) pool the 3 rows of every window: taps sit W and 2W lanes apart.
        r = jnp.maximum(x, _roll_down(x, w_in))
        r = jnp.maximum(r, _roll_down(x, 2 * w_in))
        # 2) pool the 3 columns of every window: taps sit 1 and 2 lanes apart.
        m = jnp.maximum(r, _roll_down(r, 1))
        m = jnp.maximum(m, _roll_down(r, 2))
        # 3) static log-step compaction: lane 3*ho*W + 3*j -> lane ho*Wo + j.
        #    Masks are a kernel input (no captured array constants).
        masks = mask_ref[...]                            # (n_steps, H*W) int32
        for t, s in enumerate(shifts):
            m = jnp.where(masks[t:t + 1, :] != 0, _roll_down(m, s), m)
        # 4) one dense (nc_b, Ho*Wo) slab store.
        o_ref[...] = m[..., :l_out].astype(o_ref.dtype)

    return kernel


def _pick_nc_block(nc, l_in, l_out, itemsize,
                   max_block_bytes=2 << 20, min_grid_steps=4):
    """Channel-block size for the (NC, H*W) layout.

    Candidates are divisors of NC that are multiples of the dtype sublane tile
    (8 f32 / 16 bf16 / 32 int8), plus the full NC extent (always legal).  Prefer
    the largest candidate that fits the per-block budget AND still yields
    >= min_grid_steps grid steps (pipelining + v7x megacore); otherwise the
    largest that fits; otherwise the smallest candidate.
    """
    sub = 8 * max(1, 4 // max(1, itemsize))              # dtype-aware sublane tile
    lane_words = _round_up(l_in, 128) + _round_up(l_out, 128)

    def block_bytes(b):
        return _round_up(b, sub) * lane_words * itemsize

    cands = [d for d in range(sub, nc + 1, sub) if nc % d == 0]
    if nc not in cands:
        cands.append(nc)
    fitting = [d for d in cands if block_bytes(d) <= max_block_bytes]
    pool = fitting if fitting else [min(cands)]
    pipelined = [d for d in pool if nc // d >= min_grid_steps]
    return max(pipelined) if pipelined else max(pool)


def maxpool2d_k3(x):
    """MaxPool2d(kernel_size=3, stride=3, padding=0, ceil_mode=False) on NCHW."""
    n, c, h, w = x.shape
    h_out = (h - KERNEL) // KERNEL + 1
    w_out = (w - KERNEL) // KERNEL + 1
    if h_out <= 0 or w_out <= 0:
        raise ValueError("spatial dims must be >= kernel_size=3")
    nc = n * c
    l_in = h * w
    l_out = h_out * w_out

    # Free reshape: flattened image on lanes, channels on sublanes.  Trailing
    # rows/cols (H%3, W%3) are never selected, so no floor-mode crop copy.
    xv = x.reshape(nc, l_in)

    shifts, masks_np = _compaction_schedule(h_out, w_out, w, l_in)
    masks = jnp.asarray(masks_np)                        # (n_steps, H*W) int32
    n_steps = masks.shape[0]

    nc_b = _pick_nc_block(nc, l_in, l_out, x.dtype.itemsize)
    grid = (nc // nc_b,)

    out = pl.pallas_call(
        _make_kernel(w, l_out, shifts),
        out_shape=jax.ShapeDtypeStruct((nc, l_out), x.dtype),
        grid=grid,
        in_specs=[
            pl.BlockSpec((n_steps, l_in), lambda i: (0, 0)),   # compaction masks
            pl.BlockSpec((nc_b, l_in), lambda i: (i, 0)),      # channel block
        ],
        out_specs=pl.BlockSpec((nc_b, l_out), lambda i: (i, 0)),
        compiler_params=pltpu.CompilerParams(
            dimension_semantics=("parallel",)),
    )(masks, xv)
    return out.reshape(n, c, h_out, w_out)


def _reference_maxpool(x):
    # Pure-JAX reference (XLA reduce_window) for correctness checking.
    return jax.lax.reduce_window(
        x,
        -jnp.inf,
        jax.lax.max,
        window_dimensions=(1, 1, KERNEL, KERNEL),
        window_strides=(1, 1, KERNEL, KERNEL),
        padding="VALID",
    )


if __name__ == "__main__":
    key = jax.random.PRNGKey(0)
    # Matches the module's forward: a single NCHW image batch.
    x = jax.random.normal(key, (2, 4, 16, 16), dtype=jnp.float32)

    out = jax.block_until_ready(maxpool2d_k3(x))

    ref = _reference_maxpool(x)
    assert out.shape == (2, 4, 5, 5), out.shape
    assert out.dtype == x.dtype, out.dtype
    assert jnp.allclose(out, ref), "mismatch vs reference maxpool"

    print("KERNEL_OK")
</pallas_src>

<mosaic_0001>
module attributes {stable_mosaic.version = 11 : i64} {
  func.func @kernel(%arg0: i32, %arg1: memref<8x256xi32, #tpu.memory_space<vmem>>, %arg2: memref<8x256xf32, #tpu.memory_space<vmem>>, %arg3: memref<8x25xf32, #tpu.memory_space<vmem>>) attributes {dimension_semantics = [#tpu.dimension_semantics<parallel>], iteration_bounds = array<i64: 1>, scalar_prefetch = 0 : i64, scratch_operands = 0 : i64, tpu.core_type = #tpu.core_type<tc>, window_params = [{pipeline_mode = #tpu.pipeline_mode<synchronous>, transform_indices = @transform_0, window_bounds = array<i64: 8, 256>}, {transform_indices = @transform_1, window_bounds = array<i64: 8, 256>}, {transform_indices = @transform_2, window_bounds = array<i64: 8, 25>}]} {
    %c0 = arith.constant 0 : index
    %c0_0 = arith.constant 0 : index
    %0 = vector.load %arg2[%c0, %c0_0] : memref<8x256xf32, #tpu.memory_space<vmem>>, vector<8x256xf32>
    %1 = vector.extract_strided_slice %0 {offsets = [0, 16], sizes = [8, 240], strides = [1, 1]} : vector<8x256xf32> to vector<8x240xf32>
    %2 = vector.extract_strided_slice %0 {offsets = [0, 0], sizes = [8, 16], strides = [1, 1]} : vector<8x256xf32> to vector<8x16xf32>
    %3 = tpu.concatenate %1, %2 in 1 : vector<8x240xf32>, vector<8x16xf32> -> vector<8x256xf32>
    %4 = arith.maximumf %0, %3 : vector<8x256xf32>
    %5 = vector.extract_strided_slice %0 {offsets = [0, 32], sizes = [8, 224], strides = [1, 1]} : vector<8x256xf32> to vector<8x224xf32>
    %6 = vector.extract_strided_slice %0 {offsets = [0, 0], sizes = [8, 32], strides = [1, 1]} : vector<8x256xf32> to vector<8x32xf32>
    %7 = tpu.concatenate %5, %6 in 1 : vector<8x224xf32>, vector<8x32xf32> -> vector<8x256xf32>
    %8 = arith.maximumf %4, %7 : vector<8x256xf32>
    %9 = vector.extract_strided_slice %8 {offsets = [0, 1], sizes = [8, 255], strides = [1, 1]} : vector<8x256xf32> to vector<8x255xf32>
    %10 = vector.extract_strided_slice %8 {offsets = [0, 0], sizes = [8, 1], strides = [1, 1]} : vector<8x256xf32> to vector<8x1xf32>
    %11 = tpu.concatenate %9, %10 in 1 : vector<8x255xf32>, vector<8x1xf32> -> vector<8x256xf32>
    %12 = arith.maximumf %8, %11 : vector<8x256xf32>
    %13 = vector.extract_strided_slice %8 {offsets = [0, 2], sizes = [8, 254], strides = [1, 1]} : vector<8x256xf32> to vector<8x254xf32>
    %14 = vector.extract_strided_slice %8 {offsets = [0, 0], sizes = [8, 2], strides = [1, 1]} : vector<8x256xf32> to vector<8x2xf32>
    %15 = tpu.concatenate %13, %14 in 1 : vector<8x254xf32>, vector<8x2xf32> -> vector<8x256xf32>
    %16 = arith.maximumf %12, %15 : vector<8x256xf32>
    %c0_1 = arith.constant 0 : index
    %c0_2 = arith.constant 0 : index
    %17 = vector.load %arg1[%c0_1, %c0_2] : memref<8x256xi32, #tpu.memory_space<vmem>>, vector<8x256xi32>
    %18 = vector.extract_strided_slice %17 {offsets = [0, 0], sizes = [1, 256], strides = [1, 1]} : vector<8x256xi32> to vector<1x256xi32>
    %c0_i32 = arith.constant 0 : i32
    %19 = vector.broadcast %c0_i32 : i32 to vector<1x256xi32>
    %20 = arith.cmpi ne, %18, %19 : vector<1x256xi32>
    %21 = vector.extract_strided_slice %16 {offsets = [0, 1], sizes = [8, 255], strides = [1, 1]} : vector<8x256xf32> to vector<8x255xf32>
    %22 = vector.extract_strided_slice %16 {offsets = [0, 0], sizes = [8, 1], strides = [1, 1]} : vector<8x256xf32> to vector<8x1xf32>
    %23 = tpu.concatenate %21, %22 in 1 : vector<8x255xf32>, vector<8x1xf32> -> vector<8x256xf32>
    %24 = vector.shape_cast %20 : vector<1x256xi1> to vector<1x256xi1>
    %25 = vector.broadcast %24 : vector<1x256xi1> to vector<8x256xi1>
    %26 = arith.select %25, %23, %16 : vector<8x256xi1>, vector<8x256xf32>
    %27 = vector.extract_strided_slice %17 {offsets = [1, 0], sizes = [1, 256], strides = [1, 1]} : vector<8x256xi32> to vector<1x256xi32>
    %c0_i32_3 = arith.constant 0 : i32
    %28 = vector.broadcast %c0_i32_3 : i32 to vector<1x256xi32>
    %29 = arith.cmpi ne, %27, %28 : vector<1x256xi32>
    %30 = vector.extract_strided_slice %26 {offsets = [0, 2], sizes = [8, 254], strides = [1, 1]} : vector<8x256xf32> to vector<8x254xf32>
    %31 = vector.extract_strided_slice %26 {offsets = [0, 0], sizes = [8, 2], strides = [1, 1]} : vector<8x256xf32> to vector<8x2xf32>
    %32 = tpu.concatenate %30, %31 in 1 : vector<8x254xf32>, vector<8x2xf32> -> vector<8x256xf32>
    %33 = vector.shape_cast %29 : vector<1x256xi1> to vector<1x256xi1>
    %34 = vector.broadcast %33 : vector<1x256xi1> to vector<8x256xi1>
    %35 = arith.select %34, %32, %26 : vector<8x256xi1>, vector<8x256xf32>
    %36 = vector.extract_strided_slice %17 {offsets = [2, 0], sizes = [1, 256], strides = [1, 1]} : vector<8x256xi32> to vector<1x256xi32>
    %c0_i32_4 = arith.constant 0 : i32
    %37 = vector.broadcast %c0_i32_4 : i32 to vector<1x256xi32>
    %38 = arith.cmpi ne, %36, %37 : vector<1x256xi32>
    %39 = vector.extract_strided_slice %35 {offsets = [0, 4], sizes = [8, 252], strides = [1, 1]} : vector<8x256xf32> to vector<8x252xf32>
    %40 = vector.extract_strided_slice %35 {offsets = [0, 0], sizes = [8, 4], strides = [1, 1]} : vector<8x256xf32> to vector<8x4xf32>
    %41 = tpu.concatenate %39, %40 in 1 : vector<8x252xf32>, vector<8x4xf32> -> vector<8x256xf32>
    %42 = vector.shape_cast %38 : vector<1x256xi1> to vector<1x256xi1>
    %43 = vector.broadcast %42 : vector<1x256xi1> to vector<8x256xi1>
    %44 = arith.select %43, %41, %35 : vector<8x256xi1>, vector<8x256xf32>
    %45 = vector.extract_strided_slice %17 {offsets = [3, 0], sizes = [1, 256], strides = [1, 1]} : vector<8x256xi32> to vector<1x256xi32>
    %c0_i32_5 = arith.constant 0 : i32
    %46 = vector.broadcast %c0_i32_5 : i32 to vector<1x256xi32>
    %47 = arith.cmpi ne, %45, %46 : vector<1x256xi32>
    %48 = vector.extract_strided_slice %44 {offsets = [0, 8], sizes = [8, 248], strides = [1, 1]} : vector<8x256xf32> to vector<8x248xf32>
    %49 = vector.extract_strided_slice %44 {offsets = [0, 0], sizes = [8, 8], strides = [1, 1]} : vector<8x256xf32> to vector<8x8xf32>
    %50 = tpu.concatenate %48, %49 in 1 : vector<8x248xf32>, vector<8x8xf32> -> vector<8x256xf32>
    %51 = vector.shape_cast %47 : vector<1x256xi1> to vector<1x256xi1>
    %52 = vector.broadcast %51 : vector<1x256xi1> to vector<8x256xi1>
    %53 = arith.select %52, %50, %44 : vector<8x256xi1>, vector<8x256xf32>
    %54 = vector.extract_strided_slice %17 {offsets = [4, 0], sizes = [1, 256], strides = [1, 1]} : vector<8x256xi32> to vector<1x256xi32>
    %c0_i32_6 = arith.constant 0 : i32
    %55 = vector.broadcast %c0_i32_6 : i32 to vector<1x256xi32>
    %56 = arith.cmpi ne, %54, %55 : vector<1x256xi32>
    %57 = vector.extract_strided_slice %53 {offsets = [0, 16], sizes = [8, 240], strides = [1, 1]} : vector<8x256xf32> to vector<8x240xf32>
    %58 = vector.extract_strided_slice %53 {offsets = [0, 0], sizes = [8, 16], strides = [1, 1]} : vector<8x256xf32> to vector<8x16xf32>
    %59 = tpu.concatenate %57, %58 in 1 : vector<8x240xf32>, vector<8x16xf32> -> vector<8x256xf32>
    %60 = vector.shape_cast %56 : vector<1x256xi1> to vector<1x256xi1>
    %61 = vector.broadcast %60 : vector<1x256xi1> to vector<8x256xi1>
    %62 = arith.select %61, %59, %53 : vector<8x256xi1>, vector<8x256xf32>
    %63 = vector.extract_strided_slice %17 {offsets = [5, 0], sizes = [1, 256], strides = [1, 1]} : vector<8x256xi32> to vector<1x256xi32>
    %c0_i32_7 = arith.constant 0 : i32
    %64 = vector.broadcast %c0_i32_7 : i32 to vector<1x256xi32>
    %65 = arith.cmpi ne, %63, %64 : vector<1x256xi32>
    %66 = vector.extract_strided_slice %62 {offsets = [0, 32], sizes = [8, 224], strides = [1, 1]} : vector<8x256xf32> to vector<8x224xf32>
    %67 = vector.extract_strided_slice %62 {offsets = [0, 0], sizes = [8, 32], strides = [1, 1]} : vector<8x256xf32> to vector<8x32xf32>
    %68 = tpu.concatenate %66, %67 in 1 : vector<8x224xf32>, vector<8x32xf32> -> vector<8x256xf32>
    %69 = vector.shape_cast %65 : vector<1x256xi1> to vector<1x256xi1>
    %70 = vector.broadcast %69 : vector<1x256xi1> to vector<8x256xi1>
    %71 = arith.select %70, %68, %62 : vector<8x256xi1>, vector<8x256xf32>
    %72 = vector.extract_strided_slice %17 {offsets = [6, 0], sizes = [1, 256], strides = [1, 1]} : vector<8x256xi32> to vector<1x256xi32>
    %c0_i32_8 = arith.constant 0 : i32
    %73 = vector.broadcast %c0_i32_8 : i32 to vector<1x256xi32>
    %74 = arith.cmpi ne, %72, %73 : vector<1x256xi32>
    %75 = vector.extract_strided_slice %71 {offsets = [0, 64], sizes = [8, 192], strides = [1, 1]} : vector<8x256xf32> to vector<8x192xf32>
    %76 = vector.extract_strided_slice %71 {offsets = [0, 0], sizes = [8, 64], strides = [1, 1]} : vector<8x256xf32> to vector<8x64xf32>
    %77 = tpu.concatenate %75, %76 in 1 : vector<8x192xf32>, vector<8x64xf32> -> vector<8x256xf32>
    %78 = vector.shape_cast %74 : vector<1x256xi1> to vector<1x256xi1>
    %79 = vector.broadcast %78 : vector<1x256xi1> to vector<8x256xi1>
    %80 = arith.select %79, %77, %71 : vector<8x256xi1>, vector<8x256xf32>
    %81 = vector.extract_strided_slice %17 {offsets = [7, 0], sizes = [1, 256], strides = [1, 1]} : vector<8x256xi32> to vector<1x256xi32>
    %c0_i32_9 = arith.constant 0 : i32
    %82 = vector.broadcast %c0_i32_9 : i32 to vector<1x256xi32>
    %83 = arith.cmpi ne, %81, %82 : vector<1x256xi32>
    %84 = vector.extract_strided_slice %80 {offsets = [0, 128], sizes = [8, 128], strides = [1, 1]} : vector<8x256xf32> to vector<8x128xf32>
    %85 = vector.extract_strided_slice %80 {offsets = [0, 0], sizes = [8, 128], strides = [1, 1]} : vector<8x256xf32> to vector<8x128xf32>
    %86 = tpu.concatenate %84, %85 in 1 : vector<8x128xf32>, vector<8x128xf32> -> vector<8x256xf32>
    %87 = vector.shape_cast %83 : vector<1x256xi1> to vector<1x256xi1>
    %88 = vector.broadcast %87 : vector<1x256xi1> to vector<8x256xi1>
    %89 = arith.select %88, %86, %80 : vector<8x256xi1>, vector<8x256xf32>
    %90 = vector.extract_strided_slice %89 {offsets = [0, 0], sizes = [8, 25], strides = [1, 1]} : vector<8x256xf32> to vector<8x25xf32>
    %c0_10 = arith.constant 0 : index
    %c0_11 = arith.constant 0 : index
    %91 = vector.load %arg3[%c0_10, %c0_11] : memref<8x25xf32, #tpu.memory_space<vmem>>, vector<8x25xf32>
    tpu.vector_store %arg3[%c0_10, %c0_11], %90 {strides = array<i32>} : memref<8x25xf32, #tpu.memory_space<vmem>>, vector<8x25xf32>,
    return
  }
  func.func @transform_0(%arg0: i32) -> (i32, i32) {
    %c0_i32 = arith.constant 0 : i32
    %c0_i32_0 = arith.constant 0 : i32
    %c0_i32_1 = arith.constant 0 : i32
    return %c0_i32, %c0_i32_0 : i32, i32
  }
  func.func @transform_1(%arg0: i32) -> (i32, i32) {
    %c0_i32 = arith.constant 0 : i32
    %c0_i32_0 = arith.constant 0 : i32
    return %arg0, %c0_i32 : i32, i32
  }
  func.func @transform_2(%arg0: i32) -> (i32, i32) {
    %c0_i32 = arith.constant 0 : i32
    %c0_i32_0 = arith.constant 0 : i32
    return %arg0, %c0_i32 : i32, i32
  }
}

</mosaic_0001>

<llo_original>
// kernel: tpu_custom_call.1
$region0: #{tpu_custom_call.1}
  #allocation0 [shape = 'u32[]', space=smem, size = 0x4, offset = 0x4, fixed_abs, tag = 'smem constant byte address 0x4 - core index']
  #allocation1 [shape = 'u32[72,128]{1,0:T(1,128)}', space=vmem, size = 0x9000, scoped, tag = 'internal scratch']
  %s0 = inlined_call_operand.hbm [shape: s32[8,256], index: 0, kind: input, shape index: {}]
  %s1 = inlined_call_operand.hbm [shape: f32[8,256], index: 1, kind: input, shape index: {}]
  %s2 = inlined_call_operand.hbm [shape: f32[8,25], index: 2, kind: output, shape index: {}]
  %s3 = sld [smem:[#allocation0]]
  $region26: #{tpu_custom_call.1} parent=0
    _
  %s5 = ssub.s32 1, %s3
  %s6 = scalar_select 0, %s5, %s3
  $region1: #{tpu_custom_call.1} parent=0
    #allocation2 [shape = 'u8[8192]{0}', space=vmem, size = 0x2000, scoped, tag = 'input window, operand 0, single buffered']
    #allocation3 [shape = 's32[1]{0}', space=sflag, size = 0x4, scoped, tag = 'scoped memory for tpu_custom_call.1']
    #allocation4 [shape = 's32[1]{0}', space=sflag, size = 0x4, scoped, tag = 'scoped memory for tpu_custom_call.1']
    #allocation5 [shape = 'u8[8192]{0}', space=vmem, size = 0x2000, scoped, tag = 'input window, operand 1, single buffered']
    #allocation6 [shape = 's32[1]{0}', space=sflag, size = 0x4, scoped, tag = 'scoped memory for tpu_custom_call.1']
    #allocation7 [shape = 'u8[4096]{0}', space=vmem, size = 0x1000, scoped, tag = 'output window, operand 0, single buffered']
    %7 = vsyncpa [#allocation3], 0
    %8 = vsyncpa [#allocation6], 0
    %9 = vsyncpa [#allocation4], 0
    // Predicated region
    $region2: #{tpu_custom_call.1} parent=1 // pred_check
      _
    $region3: #{tpu_custom_call.1} parent=1 // pred_check_branch
      %11 = sbr.rel (0) target = $region5
    $region4: #{tpu_custom_call.1} parent=1 // pred_region
      %13 = vsyncadd [#allocation3], 0
      %s15 = sshll.u32 %s0, 4
      %s16 = int_to_ptr.hbm [resolvable:$true] %s15
      %s17 = sshll.u32 [#allocation2], 4
      %s18 = int_to_ptr.vmem [resolvable:$true] %s17
      %20 = dma.hbm_to_vmem [thread:$0]  %s16, 256, %s18, [#allocation3]
    $region5: #{tpu_custom_call.1} parent=1 // pred_fallthru
      _
    // Predicated region
    $region6: #{tpu_custom_call.1} parent=1 // pred_check
      _
    $region7: #{tpu_custom_call.1} parent=1 // pred_check_branch
      %22 = sbr.rel (0) target = $region9
    $region8: #{tpu_custom_call.1} parent=1 // pred_region
      %24 = vsyncadd [#allocation6], 0
      %s26 = sshll.u32 %s1, 4
      %s27 = int_to_ptr.hbm [resolvable:$true] %s26
      %s28 = sshll.u32 [#allocation5], 4
      %s29 = int_to_ptr.vmem [resolvable:$true] %s28
      %31 = dma.hbm_to_vmem [thread:$0]  %s27, 256, %s29, [#allocation6]
    $region9: #{tpu_custom_call.1} parent=1 // pred_fallthru
      _
    // Predicated region
    $region10: #{tpu_custom_call.1} parent=1 // pred_check
      _
    $region11: #{tpu_custom_call.1} parent=1 // pred_check_branch
      %33 = sbr.rel (0) target = $region13
    $region12: #{tpu_custom_call.1} parent=1 // pred_region
      %35 = dma.done [#allocation3], 256
    $region13: #{tpu_custom_call.1} parent=1 // pred_fallthru
      _
    // Predicated region
    $region14: #{tpu_custom_call.1} parent=1 // pred_check
      _
    $region15: #{tpu_custom_call.1} parent=1 // pred_check_branch
      %37 = sbr.rel (0) target = $region17
    $region16: #{tpu_custom_call.1} parent=1 // pred_region
      %39 = dma.done [#allocation6], 256
    $region17: #{tpu_custom_call.1} parent=1 // pred_fallthru
      _
    %v40 = vld [vmem:[#allocation5] sm:$0xff]
    %v41 = vld [vmem:[#allocation5 + $0x8] sm:$0xff]
    %44 = vrot.lane.b32.xlu0 %v40, 112
    %v45 = vpop.permute.xlu0 %44
    %46 = vrot.lane.b32.xlu0 %v41, 112
    %v47 = vpop.permute.xlu0 %46
    %vm48 = vcmask 916480
    %v49 = vsel %vm48, %v45, %v47
    %v53 = vsel %vm48, %v47, %v45
    %v54 = vmax.f32 %v40, %v49
    %v55 = vmax.f32 %v41, %v53
    %56 = vrot.lane.b32.xlu0 %v40, 96
    %v57 = vpop.permute.xlu0 %56
    %58 = vrot.lane.b32.xlu0 %v41, 96
    %v59 = vpop.permute.xlu0 %58
    %vm60 = vcmask 785408
    %v61 = vsel %vm60, %v57, %v59
    %v65 = vsel %vm60, %v59, %v57
    %v66 = vmax.f32 %v54, %v61
    %v67 = vmax.f32 %v55, %v65
    %70 = vrot.lane.b32.xlu0 %v66, 127
    %v71 = vpop.permute.xlu0 %70
    %72 = vrot.lane.b32.xlu0 %v67, 127
    %v73 = vpop.permute.xlu0 %72
    %vm74 = vcmask 1039360
    %v75 = vsel %vm74, %v71, %v73
    %v79 = vsel %vm74, %v73, %v71
    %v80 = vmax.f32 %v66, %v75
    %v81 = vmax.f32 %v67, %v79
    %82 = vrot.lane.b32.xlu0 %v66, 126
    %v83 = vpop.permute.xlu0 %82
    %84 = vrot.lane.b32.xlu0 %v67, 126
    %v85 = vpop.permute.xlu0 %84
    %vm86 = vcmask 1031168
    %v87 = vsel %vm86, %v83, %v85
    %v91 = vsel %vm86, %v85, %v83
    %v92 = vmax.f32 %v80, %v87
    %v93 = vmax.f32 %v81, %v91
    %v94 = vld [vmem:[#allocation2] sm:$0xff]
    %v95 = vld [vmem:[#allocation2 + $0x8] sm:$0xff]
    %vm96 = vcmp.ne.s32.totalorder %v94, 0
    %vm97 = vcmp.ne.s32.totalorder %v95, 0
    %100 = vrot.lane.b32.xlu0 %v92, 127
    %v101 = vpop.permute.xlu0 %100
    %102 = vrot.lane.b32.xlu0 %v93, 127
    %v103 = vpop.permute.xlu0 %102
    %v104 = vsel %vm74, %v101, %v103
    %v108 = vsel %vm74, %v103, %v101
    %v109 = vsel %vm96, 1, 0
    %v110 = vsel %vm97, 1, 0
    %v111 = vperm.slane %v109, 0
    %v112 = vperm.slane %v110, 0
    %vm113 = vcmp.eq.s32.totalorder %v111, 1
    %vm114 = vcmp.eq.s32.totalorder %v112, 1
    %v115 = vsel %vm113, %v104, %v92
    %v116 = vsel %vm114, %v108, %v93
    %119 = vrot.lane.b32.xlu0 %v115, 126
    %v120 = vpop.permute.xlu0 %119
    %121 = vrot.lane.b32.xlu0 %v116, 126
    %v122 = vpop.permute.xlu0 %121
    %v123 = vsel %vm86, %v120, %v122
    %v127 = vsel %vm86, %v122, %v120
    %v128 = vperm.slane %v109, 1
    %v129 = vperm.slane %v110, 1
    %vm130 = vcmp.eq.s32.totalorder %v128, 1
    %vm131 = vcmp.eq.s32.totalorder %v129, 1
    %v132 = vsel %vm130, %v123, %v115
    %v133 = vsel %vm131, %v127, %v116
    %136 = vrot.lane.b32.xlu0 %v132, 124
    %v137 = vpop.permute.xlu0 %136
    %138 = vrot.lane.b32.xlu0 %v133, 124
    %v139 = vpop.permute.xlu0 %138
    %vm140 = vcmask 1014784
    %v141 = vsel %vm140, %v137, %v139
    %v145 = vsel %vm140, %v139, %v137
    %v146 = vperm.slane %v109, 2
    %v147 = vperm.slane %v110, 2
    %vm148 = vcmp.eq.s32.totalorder %v146, 1
    %vm149 = vcmp.eq.s32.totalorder %v147, 1
    %v150 = vsel %vm148, %v141, %v132
    %v151 = vsel %vm149, %v145, %v133
    %154 = vrot.lane.b32.xlu0 %v150, 120
    %v155 = vpop.permute.xlu0 %154
    %156 = vrot.lane.b32.xlu0 %v151, 120
    %v157 = vpop.permute.xlu0 %156
    %vm158 = vcmask 982016
    %v159 = vsel %vm158, %v155, %v157
    %v163 = vsel %vm158, %v157, %v155
    %v164 = vperm.slane %v109, 3
    %v165 = vperm.slane %v110, 3
    %vm166 = vcmp.eq.s32.totalorder %v164, 1
    %vm167 = vcmp.eq.s32.totalorder %v165, 1
    %v168 = vsel %vm166, %v159, %v150
    %v169 = vsel %vm167, %v163, %v151
    %172 = vrot.lane.b32.xlu0 %v168, 112
    %v173 = vpop.permute.xlu0 %172
    %174 = vrot.lane.b32.xlu0 %v169, 112
    %v175 = vpop.permute.xlu0 %174
    %v176 = vsel %vm48, %v173, %v175
    %v180 = vsel %vm48, %v175, %v173
    %v181 = vperm.slane %v109, 4
    %v182 = vperm.slane %v110, 4
    %vm183 = vcmp.eq.s32.totalorder %v181, 1
    %vm184 = vcmp.eq.s32.totalorder %v182, 1
    %v185 = vsel %vm183, %v176, %v168
    %v186 = vsel %vm184, %v180, %v169
    %189 = vrot.lane.b32.xlu0 %v185, 96
    %v190 = vpop.permute.xlu0 %189
    %191 = vrot.lane.b32.xlu0 %v186, 96
    %v192 = vpop.permute.xlu0 %191
    %v193 = vsel %vm60, %v190, %v192
    %v197 = vsel %vm60, %v192, %v190
    %v198 = vperm.slane %v109, 5
    %v199 = vperm.slane %v110, 5
    %vm200 = vcmp.eq.s32.totalorder %v198, 1
    %vm201 = vcmp.eq.s32.totalorder %v199, 1
    %v202 = vsel %vm200, %v193, %v185
    %v203 = vsel %vm201, %v197, %v186
    %206 = vrot.lane.b32.xlu0 %v202, 64
    %v207 = vpop.permute.xlu0 %206
    %208 = vrot.lane.b32.xlu0 %v203, 64
    %v209 = vpop.permute.xlu0 %208
    %vm210 = vcmask 523264
    %v211 = vsel %vm210, %v207, %v209
    %v215 = vsel %vm210, %v209, %v207
    %v216 = vperm.slane %v109, 6
    %v217 = vperm.slane %v110, 6
    %vm218 = vcmp.eq.s32.totalorder %v216, 1
    %vm219 = vcmp.eq.s32.totalorder %v217, 1
    %v220 = vsel %vm218, %v211, %v202
    %v221 = vsel %vm219, %v215, %v203
    %v222 = vperm.slane %v109, 7
    %vm223 = vcmp.eq.s32.totalorder %v222, 1
    %v224 = vsel %vm223, %v221, %v220
    %vm225 = vcmask 203776
    %226 = vst.msk [vmem:[#allocation7] sm:$0xff] %vm225, %v224
    // Predicated region
    $region18: #{tpu_custom_call.1} parent=1 // pred_check
      _
    $region19: #{tpu_custom_call.1} parent=1 // pred_check_branch
      %228 = sbr.rel (0) target = $region21
    $region20: #{tpu_custom_call.1} parent=1 // pred_region
      %230 = vsyncadd [#allocation4], 0
      %s232 = sshll.u32 [#allocation7], 4
      %s233 = int_to_ptr.vmem [resolvable:$true] %s232
      %s234 = sshll.u32 %s2, 4
      %s235 = int_to_ptr.hbm [resolvable:$true] %s234
      %237 = dma.vmem_to_hbm [thread:$0]  %s233, 128, %s235, [#allocation4]
    $region21: #{tpu_custom_call.1} parent=1 // pred_fallthru
      _
    // Predicated region
    $region22: #{tpu_custom_call.1} parent=1 // pred_check
      _
    $region23: #{tpu_custom_call.1} parent=1 // pred_check_branch
      %239 = sbr.rel (0) target = $region25
    $region24: #{tpu_custom_call.1} parent=1 // pred_region
      %241 = dma.done [#allocation4], 128
    $region25: #{tpu_custom_call.1} parent=1 // pred_fallthru
      _
    %242 = vsyncpa [#allocation3], 1
    %243 = vsyncpa [#allocation6], 1
    %244 = vsyncpa [#allocation4], 1

</llo_original>
